<compile_context>
chip_gen: v7x
topology: tpu7x:2x2x1
jax: 0.10.0
libtpu: 0.0.40
codegen_flags: <defaults>
</compile_context>

<pallas_src>
from functools import lru_cache, partial
from math import pi as PI

import numpy as np
import jax
import jax.numpy as jnp
from jax.experimental import pallas as pl
from jax.experimental.pallas import tpu as pltpu


# ----------------------------------------------------------------------------
# Host-side (numpy, float64) construction of the analytic basis constants.
# Replaces sympy + torch_geometric.dimenet_utils: z_ij = j-th zero of spherical
# Bessel j_i, N_ij = 1/sqrt(0.5 * j_{i+1}(z_ij)^2), Y_l^0 prefactor sqrt((2l+1)/4pi).
# ----------------------------------------------------------------------------
def _spherical_jn_np(l, u):
    u = np.asarray(u, dtype=np.float64)
    j0 = np.sin(u) / u
    if l == 0:
        return j0
    j1 = np.sin(u) / u**2 - np.cos(u) / u
    if l == 1:
        return j1
    jm1, jcur = j0, j1
    for ll in range(2, l + 1):
        jm1, jcur = jcur, (2 * ll - 1) / u * jcur - jm1
    return jcur


def _jn_zeros(order, num_zeros):
    """First `num_zeros` positive roots of spherical Bessel j_order (bisection)."""
    lo, hi, step = 0.05, (num_zeros + order + 2) * np.pi, 0.01
    grid = np.arange(lo, hi, step)
    vals = _spherical_jn_np(order, grid)
    roots = []
    for a, b, fa, fb in zip(grid[:-1], grid[1:], vals[:-1], vals[1:]):
        if fa == 0.0:
            roots.append(float(a))
        elif fa * fb < 0.0:
            x0, x1, f0 = a, b, fa
            for _ in range(80):
                m = 0.5 * (x0 + x1)
                fm = _spherical_jn_np(order, m)
                if f0 * fm <= 0.0:
                    x1 = m
                else:
                    x0, f0 = m, fm
            roots.append(0.5 * (x0 + x1))
        if len(roots) >= num_zeros:
            break
    assert len(roots) >= num_zeros
    return np.array(roots[:num_zeros], dtype=np.float64)


@lru_cache(maxsize=None)
def _basis_constants(num_spherical, num_radial):
    """zeros[l,j] = z_lj ; inv_zeros = 1/z_lj ; scale[l,j] = N_lj*sqrt((2l+1)/4pi)."""
    zeros = np.zeros((num_spherical, num_radial), dtype=np.float64)
    scale = np.zeros((num_spherical, num_radial), dtype=np.float64)
    for i in range(num_spherical):
        z = _jn_zeros(i, num_radial)
        zeros[i] = z
        norm = 1.0 / np.sqrt(0.5 * _spherical_jn_np(i + 1, z) ** 2)
        pref = np.sqrt((2 * i + 1) / (4.0 * PI))
        scale[i] = norm * pref
    inv_zeros = 1.0 / zeros
    return (zeros.astype(np.float32),
            inv_zeros.astype(np.float32),
            scale.astype(np.float32))


# ----------------------------------------------------------------------------
# Pallas kernel
# ----------------------------------------------------------------------------
def _make_kernel(num_spherical, num_radial_padded, cutoff, envelope_exponent):
    p = envelope_exponent + 1
    a = -(p + 1) * (p + 2) / 2.0
    b = p * (p + 2.0)
    c = -p * (p + 1) / 2.0
    inv_cutoff = 1.0 / cutoff
    kp = num_radial_padded  # rows per l-block (multiple of 8 -> aligned stores)

    def kernel(z_ref, iz_ref, s_ref, d_ref, ang_ref, out_ref):
        # z/iz/s_ref: (n*kp, 1) resident; d/ang_ref: (1, TILE_T); out: (n*kp, TILE_T)
        x = d_ref[...] * inv_cutoff                       # (1, T)
        inv_x = 1.0 / x                                   # exact divide kept: feeds env

        # Envelope: where(x<1, 1/x + x^(p-1)*(a + x*(b + c*x)), 0)  (Horner + select)
        if p - 1 == 0:
            x_pm1 = jnp.ones_like(x)
        else:
            x_pm1 = x
            for _ in range(p - 2):
                x_pm1 = x_pm1 * x
        env = jnp.where(x < 1.0, inv_x + x_pm1 * (a + x * (b + c * x)), 0.0)

        ct = jnp.cos(ang_ref[...])                        # (1, T)

        # Legendre recurrence for P_l(cos theta)
        p_prev = jnp.ones_like(ct)                        # P_0
        p_cur = ct                                        # P_1
        for l in range(num_spherical):
            if l == 0:
                w = env                                   # P_0 == 1
            elif l == 1:
                w = env * p_cur
            else:
                P_l = ((2 * l - 1) * ct * p_cur - (l - 1) * p_prev) * (1.0 / l)
                p_prev, p_cur = p_cur, P_l
                w = env * P_l                             # (1, T)

            z_l = z_ref[l * kp:(l + 1) * kp, :]           # (kp, 1)
            iz_l = iz_ref[l * kp:(l + 1) * kp, :]         # (kp, 1)
            s_l = s_ref[l * kp:(l + 1) * kp, :]           # (kp, 1)

            u = z_l * x                                   # (kp, T)
            inv_u = iz_l * inv_x                          # no per-element divide: u=z*x

            su = jnp.sin(u)
            jl = su * inv_u                               # j_0
            if l >= 1:
                cu = jnp.cos(u)                           # unused for l==0 -> skipped
                jm1, jl = jl, (jl - cu) * inv_u           # j_1 = (j_0 - cos u)/u
                for ll in range(2, l + 1):
                    jm1, jl = jl, (2 * ll - 1) * inv_u * jl - jm1

            # direct, sublane-aligned, lane-dense store of this l-block
            out_ref[l * kp:(l + 1) * kp, :] = w * (s_l * jl)

    return kernel


@partial(jax.jit,
         static_argnames=("num_spherical", "num_radial", "cutoff",
                          "envelope_exponent", "tile", "transpose_output"))
def spherical_basis_layer(dist, angle, idx_kj, *, num_spherical=3, num_radial=8,
                          cutoff=5.0, envelope_exponent=5, tile=16384,
                          transpose_output=True):
    """dist: (E,), angle: (T,), idx_kj: (T,) int.

    Returns (T, num_spherical*num_radial) matching the PyTorch module when
    transpose_output=True (default); with transpose_output=False returns the
    lane-dense (num_spherical*num_radial, T) layout, skipping the extra HBM
    transpose pass (recommended when the caller can fuse the transpose into a
    downstream matmul).
    """
    zeros_np, inv_zeros_np, scale_np = _basis_constants(num_spherical, num_radial)
    n, k = num_spherical, num_radial
    nk = n * k
    k_pad = -(-k // 8) * 8          # sublane-align each l-block -> unmasked stores

    def pad_cols(arr, fill):
        if k_pad == k:
            return np.ascontiguousarray(arr, dtype=np.float32)
        padded = np.full((n, k_pad), fill, dtype=np.float32)
        padded[:, :k] = arr
        return padded

    z_np = pad_cols(zeros_np, 1.0).reshape(n * k_pad, 1)
    iz_np = pad_cols(inv_zeros_np, 1.0).reshape(n * k_pad, 1)
    s_np = pad_cols(scale_np, 0.0).reshape(n * k_pad, 1)

    # Glue (fused under this jit): 1-D gather; rbf is elementwise per edge so
    # rbf[idx_kj] == rbf(dist[idx_kj]).
    d_kj = dist[idx_kj].astype(jnp.float32)
    ang = angle.astype(jnp.float32)
    T = d_kj.shape[0]

    tile = max(128, (tile // 128) * 128)                  # multiple of 128 lanes
    # keep >= 2 grid steps when there is enough work so both v7x TCs get a share
    half_t = max(128, pl.cdiv(T, 2 * 128) * 128)
    tile_t = min(tile, half_t)
    T_pad = pl.cdiv(T, tile_t) * tile_t
    pad = T_pad - T

    d2 = jnp.pad(d_kj, (0, pad), constant_values=1.0).reshape(1, T_pad)
    a2 = jnp.pad(ang, (0, pad), constant_values=0.0).reshape(1, T_pad)
    z2 = jnp.asarray(z_np)
    iz2 = jnp.asarray(iz_np)
    s2 = jnp.asarray(s_np)

    kernel = _make_kernel(num_spherical, k_pad, cutoff, envelope_exponent)
    rows = n * k_pad

    out = pl.pallas_call(
        kernel,
        out_shape=jax.ShapeDtypeStruct((rows, T_pad), jnp.float32),
        grid=(T_pad // tile_t,),
        in_specs=[
            pl.BlockSpec((rows, 1), lambda t: (0, 0)),      # bessel zeros (resident)
            pl.BlockSpec((rows, 1), lambda t: (0, 0)),      # 1/zeros      (resident)
            pl.BlockSpec((rows, 1), lambda t: (0, 0)),      # norm * Y pref (resident)
            pl.BlockSpec((1, tile_t), lambda t: (0, t)),    # dist[idx_kj], lanes = triplets
            pl.BlockSpec((1, tile_t), lambda t: (0, t)),    # angle,        lanes = triplets
        ],
        out_specs=pl.BlockSpec((rows, tile_t), lambda t: (0, t)),
        compiler_params=pltpu.CompilerParams(
            dimension_semantics=("parallel",),
            vmem_limit_bytes=32 * 1024 * 1024),
    )(z2, iz2, s2, d2, a2)

    if k_pad != k:
        out = out.reshape(n, k_pad, T_pad)[:, :k, :].reshape(nk, T_pad)
    out = out[:, :T]                                       # (n*k, T) lane-dense
    if transpose_output:
        out = out.T                                        # module's (T, n*k) layout
    return out


# ----------------------------------------------------------------------------
# Pure-JAX reference (same math, module-ordered) for a consistency check.
# ----------------------------------------------------------------------------
def _reference(dist, angle, idx_kj, num_spherical, num_radial, cutoff, envelope_exponent):
    zeros_np, _, scale_np = _basis_constants(num_spherical, num_radial)
    p = envelope_exponent + 1
    a = -(p + 1) * (p + 2) / 2.0
    b = p * (p + 2.0)
    c = -p * (p + 1) / 2.0

    x = (dist / cutoff).astype(jnp.float32)
    env = (1.0 / x + a * x ** (p - 1) + b * x ** p + c * x ** (p + 1)) * (x < 1.0)

    def jl_fn(l, u):
        su, cu = jnp.sin(u), jnp.cos(u)
        j0 = su / u
        if l == 0:
            return j0
        jm1, jcur = j0, su / (u * u) - cu / u
        for ll in range(2, l + 1):
            jm1, jcur = jcur, (2 * ll - 1) / u * jcur - jm1
        return jcur

    rbf_cols = []
    for i in range(num_spherical):
        u = x[:, None] * jnp.asarray(zeros_np[i])[None, :]
        rbf_cols.append(jnp.asarray(scale_np[i])[None, :] * jl_fn(i, u))
    rbf = env[:, None] * jnp.concatenate(rbf_cols, axis=-1)   # (E, n*k), Y pref folded

    ct = jnp.cos(angle.astype(jnp.float32))
    Ps = [jnp.ones_like(ct), ct]
    for l in range(2, num_spherical):
        Ps.append(((2 * l - 1) * ct * Ps[-1] - (l - 1) * Ps[-2]) / float(l))
    cbf = jnp.stack(Ps[:num_spherical], axis=1)               # P_l(cos theta)

    n, k = num_spherical, num_radial
    return (rbf[idx_kj].reshape(-1, n, k) * cbf.reshape(-1, n, 1)).reshape(-1, n * k)


if __name__ == "__main__":
    cutoff, envelope_exponent = 5.0, 5
    E, T = 64, 256

    key = jax.random.PRNGKey(0)
    k1, k2, k3 = jax.random.split(key, 3)
    dist = jax.random.uniform(k1, (E,), minval=0.5, maxval=cutoff, dtype=jnp.float32)
    angle = jax.random.uniform(k2, (T,), minval=0.0, maxval=PI, dtype=jnp.float32)
    idx_kj = jax.random.randint(k3, (T,), 0, E, dtype=jnp.int32)

    # Default config (num_spherical=3, num_radial=8), module-exact (T, n*k) layout.
    out = jax.block_until_ready(
        spherical_basis_layer(dist, angle, idx_kj,
                              num_spherical=3, num_radial=8,
                              cutoff=cutoff, envelope_exponent=envelope_exponent))
    ref = _reference(dist, angle, idx_kj, 3, 8, cutoff, envelope_exponent)
    assert out.shape == (T, 24)
    np.testing.assert_allclose(np.asarray(out), np.asarray(ref), rtol=2e-4, atol=2e-4)

    # Lane-dense (n*k, T) layout (no wrapper transpose) — perf-preferred output.
    out_nkT = jax.block_until_ready(
        spherical_basis_layer(dist, angle, idx_kj,
                              num_spherical=3, num_radial=8,
                              cutoff=cutoff, envelope_exponent=envelope_exponent,
                              transpose_output=False))
    np.testing.assert_allclose(np.asarray(out_nkT), np.asarray(ref).T,
                               rtol=2e-4, atol=2e-4)

    # num_radial not a multiple of 8 exercises the sublane-padding path.
    out6 = jax.block_until_ready(
        spherical_basis_layer(dist, angle, idx_kj,
                              num_spherical=3, num_radial=6,
                              cutoff=cutoff, envelope_exponent=envelope_exponent))
    ref6 = _reference(dist, angle, idx_kj, 3, 6, cutoff, envelope_exponent)
    np.testing.assert_allclose(np.asarray(out6), np.asarray(ref6),
                               rtol=2e-4, atol=2e-4)

    print("KERNEL_OK")
</pallas_src>

<mosaic_0001>
module attributes {stable_mosaic.version = 11 : i64} {
  func.func @kernel(%arg0: i32, %arg1: memref<24x1xf32, #tpu.memory_space<vmem>>, %arg2: memref<24x1xf32, #tpu.memory_space<vmem>>, %arg3: memref<24x1xf32, #tpu.memory_space<vmem>>, %arg4: memref<1x128xf32, #tpu.memory_space<vmem>>, %arg5: memref<1x128xf32, #tpu.memory_space<vmem>>, %arg6: memref<24x128xf32, #tpu.memory_space<vmem>>) attributes {dimension_semantics = [#tpu.dimension_semantics<parallel>], iteration_bounds = array<i64: 2>, scalar_prefetch = 0 : i64, scratch_operands = 0 : i64, tpu.core_type = #tpu.core_type<tc>, window_params = [{pipeline_mode = #tpu.pipeline_mode<synchronous>, transform_indices = @transform_0, window_bounds = array<i64: 24, 1>}, {pipeline_mode = #tpu.pipeline_mode<synchronous>, transform_indices = @transform_1, window_bounds = array<i64: 24, 1>}, {pipeline_mode = #tpu.pipeline_mode<synchronous>, transform_indices = @transform_2, window_bounds = array<i64: 24, 1>}, {transform_indices = @transform_3, window_bounds = array<i64: 1, 128>}, {transform_indices = @transform_4, window_bounds = array<i64: 1, 128>}, {transform_indices = @transform_5, window_bounds = array<i64: 24, 128>}]} {
    %c0 = arith.constant 0 : index
    %c0_0 = arith.constant 0 : index
    %0 = vector.load %arg4[%c0, %c0_0] : memref<1x128xf32, #tpu.memory_space<vmem>>, vector<1x128xf32>
    %cst = arith.constant 2.000000e-01 : f32
    %1 = vector.broadcast %cst : f32 to vector<1x128xf32>
    %2 = arith.mulf %0, %1 : vector<1x128xf32>
    %cst_1 = arith.constant 1.000000e+00 : f32
    %3 = vector.broadcast %cst_1 : f32 to vector<1x128xf32>
    %4 = arith.divf %3, %2 : vector<1x128xf32>
    %5 = arith.mulf %2, %2 : vector<1x128xf32>
    %6 = arith.mulf %5, %2 : vector<1x128xf32>
    %7 = arith.mulf %6, %2 : vector<1x128xf32>
    %8 = arith.mulf %7, %2 : vector<1x128xf32>
    %cst_2 = arith.constant 1.000000e+00 : f32
    %9 = vector.broadcast %cst_2 : f32 to vector<1x128xf32>
    %10 = arith.cmpf olt, %2, %9 : vector<1x128xf32>
    %cst_3 = arith.constant -2.100000e+01 : f32
    %11 = vector.broadcast %cst_3 : f32 to vector<1x128xf32>
    %12 = arith.mulf %11, %2 : vector<1x128xf32>
    %cst_4 = arith.constant 4.800000e+01 : f32
    %13 = vector.broadcast %cst_4 : f32 to vector<1x128xf32>
    %14 = arith.addf %13, %12 : vector<1x128xf32>
    %15 = arith.mulf %2, %14 : vector<1x128xf32>
    %cst_5 = arith.constant -2.800000e+01 : f32
    %16 = vector.broadcast %cst_5 : f32 to vector<1x128xf32>
    %17 = arith.addf %16, %15 : vector<1x128xf32>
    %18 = arith.mulf %8, %17 : vector<1x128xf32>
    %19 = arith.addf %4, %18 : vector<1x128xf32>
    %cst_6 = arith.constant 0.000000e+00 : f32
    %20 = vector.broadcast %cst_6 : f32 to vector<1x128xf32>
    %21 = arith.select %10, %19, %20 : vector<1x128xi1>, vector<1x128xf32>
    %c0_7 = arith.constant 0 : index
    %c0_8 = arith.constant 0 : index
    %22 = vector.load %arg5[%c0_7, %c0_8] : memref<1x128xf32, #tpu.memory_space<vmem>>, vector<1x128xf32>
    %23 = math.cos %22 : vector<1x128xf32>
    %cst_9 = arith.constant 1.000000e+00 : f32
    %24 = vector.broadcast %cst_9 : f32 to vector<1x128xf32>
    %c0_10 = arith.constant 0 : index
    %c0_11 = arith.constant 0 : index
    %25 = vector.load %arg1[%c0_10, %c0_11] : memref<24x1xf32, #tpu.memory_space<vmem>>, vector<8x1xf32>
    %c0_12 = arith.constant 0 : index
    %c0_13 = arith.constant 0 : index
    %26 = vector.load %arg2[%c0_12, %c0_13] : memref<24x1xf32, #tpu.memory_space<vmem>>, vector<8x1xf32>
    %c0_14 = arith.constant 0 : index
    %c0_15 = arith.constant 0 : index
    %27 = vector.load %arg3[%c0_14, %c0_15] : memref<24x1xf32, #tpu.memory_space<vmem>>, vector<8x1xf32>
    %28 = vector.broadcast %25 : vector<8x1xf32> to vector<8x128xf32>
    %29 = vector.broadcast %2 : vector<1x128xf32> to vector<8x128xf32>
    %30 = arith.mulf %28, %29 : vector<8x128xf32>
    %31 = vector.broadcast %26 : vector<8x1xf32> to vector<8x128xf32>
    %32 = vector.broadcast %4 : vector<1x128xf32> to vector<8x128xf32>
    %33 = arith.mulf %31, %32 : vector<8x128xf32>
    %34 = math.sin %30 : vector<8x128xf32>
    %35 = arith.mulf %34, %33 : vector<8x128xf32>
    %36 = vector.broadcast %27 : vector<8x1xf32> to vector<8x128xf32>
    %37 = arith.mulf %36, %35 : vector<8x128xf32>
    %38 = vector.broadcast %21 : vector<1x128xf32> to vector<8x128xf32>
    %39 = arith.mulf %38, %37 : vector<8x128xf32>
    %c0_16 = arith.constant 0 : index
    %c0_17 = arith.constant 0 : index
    %40 = vector.load %arg6[%c0_16, %c0_17] : memref<24x128xf32, #tpu.memory_space<vmem>>, vector<8x128xf32>
    tpu.vector_store %arg6[%c0_16, %c0_17], %39 {strides = array<i32>} : memref<24x128xf32, #tpu.memory_space<vmem>>, vector<8x128xf32>,
    %41 = arith.mulf %21, %23 : vector<1x128xf32>
    %c8 = arith.constant 8 : index
    %c0_18 = arith.constant 0 : index
    %42 = vector.load %arg1[%c8, %c0_18] : memref<24x1xf32, #tpu.memory_space<vmem>>, vector<8x1xf32>
    %c8_19 = arith.constant 8 : index
    %c0_20 = arith.constant 0 : index
    %43 = vector.load %arg2[%c8_19, %c0_20] : memref<24x1xf32, #tpu.memory_space<vmem>>, vector<8x1xf32>
    %c8_21 = arith.constant 8 : index
    %c0_22 = arith.constant 0 : index
    %44 = vector.load %arg3[%c8_21, %c0_22] : memref<24x1xf32, #tpu.memory_space<vmem>>, vector<8x1xf32>
    %45 = vector.broadcast %42 : vector<8x1xf32> to vector<8x128xf32>
    %46 = vector.broadcast %2 : vector<1x128xf32> to vector<8x128xf32>
    %47 = arith.mulf %45, %46 : vector<8x128xf32>
    %48 = vector.broadcast %43 : vector<8x1xf32> to vector<8x128xf32>
    %49 = vector.broadcast %4 : vector<1x128xf32> to vector<8x128xf32>
    %50 = arith.mulf %48, %49 : vector<8x128xf32>
    %51 = math.sin %47 : vector<8x128xf32>
    %52 = arith.mulf %51, %50 : vector<8x128xf32>
    %53 = math.cos %47 : vector<8x128xf32>
    %54 = arith.subf %52, %53 : vector<8x128xf32>
    %55 = arith.mulf %54, %50 : vector<8x128xf32>
    %56 = vector.broadcast %44 : vector<8x1xf32> to vector<8x128xf32>
    %57 = arith.mulf %56, %55 : vector<8x128xf32>
    %58 = vector.broadcast %41 : vector<1x128xf32> to vector<8x128xf32>
    %59 = arith.mulf %58, %57 : vector<8x128xf32>
    %c8_23 = arith.constant 8 : index
    %c0_24 = arith.constant 0 : index
    %60 = vector.load %arg6[%c8_23, %c0_24] : memref<24x128xf32, #tpu.memory_space<vmem>>, vector<8x128xf32>
    tpu.vector_store %arg6[%c8_23, %c0_24], %59 {strides = array<i32>} : memref<24x128xf32, #tpu.memory_space<vmem>>, vector<8x128xf32>,
    %cst_25 = arith.constant 3.000000e+00 : f32
    %61 = vector.broadcast %cst_25 : f32 to vector<1x128xf32>
    %62 = arith.mulf %61, %23 : vector<1x128xf32>
    %63 = arith.mulf %62, %23 : vector<1x128xf32>
    %cst_26 = arith.constant 1.000000e+00 : f32
    %64 = vector.broadcast %cst_26 : f32 to vector<1x128xf32>
    %65 = arith.mulf %64, %24 : vector<1x128xf32>
    %66 = arith.subf %63, %65 : vector<1x128xf32>
    %cst_27 = arith.constant 5.000000e-01 : f32
    %67 = vector.broadcast %cst_27 : f32 to vector<1x128xf32>
    %68 = arith.mulf %66, %67 : vector<1x128xf32>
    %69 = arith.mulf %21, %68 : vector<1x128xf32>
    %c16 = arith.constant 16 : index
    %c0_28 = arith.constant 0 : index
    %70 = vector.load %arg1[%c16, %c0_28] : memref<24x1xf32, #tpu.memory_space<vmem>>, vector<8x1xf32>
    %c16_29 = arith.constant 16 : index
    %c0_30 = arith.constant 0 : index
    %71 = vector.load %arg2[%c16_29, %c0_30] : memref<24x1xf32, #tpu.memory_space<vmem>>, vector<8x1xf32>
    %c16_31 = arith.constant 16 : index
    %c0_32 = arith.constant 0 : index
    %72 = vector.load %arg3[%c16_31, %c0_32] : memref<24x1xf32, #tpu.memory_space<vmem>>, vector<8x1xf32>
    %73 = vector.broadcast %70 : vector<8x1xf32> to vector<8x128xf32>
    %74 = vector.broadcast %2 : vector<1x128xf32> to vector<8x128xf32>
    %75 = arith.mulf %73, %74 : vector<8x128xf32>
    %76 = vector.broadcast %71 : vector<8x1xf32> to vector<8x128xf32>
    %77 = vector.broadcast %4 : vector<1x128xf32> to vector<8x128xf32>
    %78 = arith.mulf %76, %77 : vector<8x128xf32>
    %79 = math.sin %75 : vector<8x128xf32>
    %80 = arith.mulf %79, %78 : vector<8x128xf32>
    %81 = math.cos %75 : vector<8x128xf32>
    %82 = arith.subf %80, %81 : vector<8x128xf32>
    %83 = arith.mulf %82, %78 : vector<8x128xf32>
    %cst_33 = arith.constant 3.000000e+00 : f32
    %84 = vector.broadcast %cst_33 : f32 to vector<8x128xf32>
    %85 = arith.mulf %84, %78 : vector<8x128xf32>
    %86 = arith.mulf %85, %83 : vector<8x128xf32>
    %87 = arith.subf %86, %80 : vector<8x128xf32>
    %88 = vector.broadcast %72 : vector<8x1xf32> to vector<8x128xf32>
    %89 = arith.mulf %88, %87 : vector<8x128xf32>
    %90 = vector.broadcast %69 : vector<1x128xf32> to vector<8x128xf32>
    %91 = arith.mulf %90, %89 : vector<8x128xf32>
    %c16_34 = arith.constant 16 : index
    %c0_35 = arith.constant 0 : index
    %92 = vector.load %arg6[%c16_34, %c0_35] : memref<24x128xf32, #tpu.memory_space<vmem>>, vector<8x128xf32>
    tpu.vector_store %arg6[%c16_34, %c0_35], %91 {strides = array<i32>} : memref<24x128xf32, #tpu.memory_space<vmem>>, vector<8x128xf32>,
    return
  }
  func.func @transform_0(%arg0: i32) -> (i32, i32) {
    %c0_i32 = arith.constant 0 : i32
    %c0_i32_0 = arith.constant 0 : i32
    %c0_i32_1 = arith.constant 0 : i32
    return %c0_i32, %c0_i32_0 : i32, i32
  }
  func.func @transform_1(%arg0: i32) -> (i32, i32) {
    %c0_i32 = arith.constant 0 : i32
    %c0_i32_0 = arith.constant 0 : i32
    %c0_i32_1 = arith.constant 0 : i32
    return %c0_i32, %c0_i32_0 : i32, i32
  }
  func.func @transform_2(%arg0: i32) -> (i32, i32) {
    %c0_i32 = arith.constant 0 : i32
    %c0_i32_0 = arith.constant 0 : i32
    %c0_i32_1 = arith.constant 0 : i32
    return %c0_i32, %c0_i32_0 : i32, i32
  }
  func.func @transform_3(%arg0: i32) -> (i32, i32) {
    %c0_i32 = arith.constant 0 : i32
    %c0_i32_0 = arith.constant 0 : i32
    return %c0_i32, %arg0 : i32, i32
  }
  func.func @transform_4(%arg0: i32) -> (i32, i32) {
    %c0_i32 = arith.constant 0 : i32
    %c0_i32_0 = arith.constant 0 : i32
    return %c0_i32, %arg0 : i32, i32
  }
  func.func @transform_5(%arg0: i32) -> (i32, i32) {
    %c0_i32 = arith.constant 0 : i32
    %c0_i32_0 = arith.constant 0 : i32
    return %c0_i32, %arg0 : i32, i32
  }
}

</mosaic_0001>

<llo_original>
// kernel: spherical_basis_layer.1
$region0: #{spherical_basis_layer.1}
  #allocation0 [shape = 'u32[]', space=smem, size = 0x4, offset = 0x4, fixed_abs, tag = 'smem constant byte address 0x4 - core index']
  #allocation1 [shape = 'u32[144,128]{1,0:T(1,128)}', space=vmem, size = 0x12000, scoped, tag = 'internal scratch']
  %s0 = inlined_call_operand.vmem [shape: f32[24,1], index: 0, kind: input, shape index: {}]
  %s1 = inlined_call_operand.vmem [shape: f32[24,1], index: 1, kind: input, shape index: {}]
  %s2 = inlined_call_operand.vmem [shape: f32[24,1], index: 2, kind: input, shape index: {}]
  %s3 = inlined_call_operand.vmem [shape: f32[1,256], index: 3, kind: input, shape index: {}]
  %s4 = inlined_call_operand.vmem [shape: f32[1,256], index: 4, kind: input, shape index: {}]
  %s5 = inlined_call_operand.hbm [shape: f32[24,256], index: 5, kind: output, shape index: {}]
  %s6 = sld [smem:[#allocation0]]
  $region53: #{spherical_basis_layer.1} parent=0
    _
  %s8 = ssub.s32 1, %s6
  %s9 = scalar_select 0, %s8, %s6
  $region1: #{spherical_basis_layer.1} parent=0
    #allocation2 [shape = 'u8[24576]{0}', space=vmem, size = 0x6000, scoped, tag = 'output window, operand 0']
    #allocation3 [shape = 's32[2]{0}', space=sflag, size = 0x8, scoped, tag = 'scoped memory for spherical_basis_layer.1']
    %10 = vsyncpa [#allocation3], 0
    %s11 = scalar_lea.sflag [#allocation3], 1
    %12 = vsyncpa %s11, 0
    loop: start=0, step=1, limit=4
    $region2: #{spherical_basis_layer.1} parent=1 // loop_pre_header
      _
    $region3: #{spherical_basis_layer.1} parent=1 // loop_header
      %s14 = sphi 0, %s18
      %p15 = scmp.ge.s32.totalorder %s14, 4
      %s22 = sphi 0, %s22
      %s24 = sphi 0, %s22
      %s25 = sphi 0, %s24
      %s39 = sphi 0, %s25
      %s43 = sphi 0, %s43
      %s45 = sphi 0, %s43
      %s46 = sphi 0, %s45
      %s60 = sphi 0, %s46
      %s64 = sphi 0, %s64
      %s66 = sphi 0, %s64
      %s67 = sphi 0, %s66
      %s81 = sphi 0, %s67
      %s87 = sphi 0, %s89
      %s90 = sphi 0, %s87
      %s91 = sphi 0, %s90
      %s107 = sphi 0, %s91
      %s113 = sphi 0, %s115
      %s116 = sphi 0, %s113
      %s117 = sphi 0, %s116
      %s133 = sphi 0, %s117
      %s139 = sphi 0, %s141
      %s142 = sphi 0, %s139
      %s143 = sphi 0, %s142
      %s159 = sphi 0, %s143
    $region4: #{spherical_basis_layer.1} parent=1 // loop_header_branch
      %17 = sbr.rel (%p15) target = $region8
    $region5: #{spherical_basis_layer.1} parent=1 // loop_body
      %s19 = ssub.s32 %s14, 1
      %s20 = ssub.s32 %s14, 2
      %s21 = sadd.s32 %s14, 1
      %s23 = sadd.s32 %s22, 1
      %p26 = scmp.eq.s32.totalorder %s14, 1
      %p27 = scmp.ne.s32.totalorder %s22, %s24
      %p28 = scmp.eq.s32.totalorder %s14, 0
      %p29 = por %p27, %p28
      %p30 = scmp.ne.s32.totalorder %s22, %s24
      %p31 = scmp.eq.s32.totalorder %s19, 1
      %p32 = por %p30, %p31
      %p33 = scmp.ne.s32.totalorder %s24, %s25
      %p34 = scmp.eq.s32.totalorder %s19, 0
      %p35 = por %p33, %p34
      %p36 = scmp.ne.s32.totalorder %s24, %s25
      %p37 = scmp.eq.s32.totalorder %s20, 1
      %p38 = por %p36, %p37
      %p40 = scmp.ne.s32.totalorder %s25, %s39
      %p41 = scmp.eq.s32.totalorder %s20, 0
      %p42 = por %p40, %p41
      %s44 = sadd.s32 %s43, 1
      %p47 = scmp.eq.s32.totalorder %s14, 1
      %p48 = scmp.ne.s32.totalorder %s43, %s45
      %p49 = scmp.eq.s32.totalorder %s14, 0
      %p50 = por %p48, %p49
      %p51 = scmp.ne.s32.totalorder %s43, %s45
      %p52 = scmp.eq.s32.totalorder %s19, 1
      %p53 = por %p51, %p52
      %p54 = scmp.ne.s32.totalorder %s45, %s46
      %p55 = scmp.eq.s32.totalorder %s19, 0
      %p56 = por %p54, %p55
      %p57 = scmp.ne.s32.totalorder %s45, %s46
      %p58 = scmp.eq.s32.totalorder %s20, 1
      %p59 = por %p57, %p58
      %p61 = scmp.ne.s32.totalorder %s46, %s60
      %p62 = scmp.eq.s32.totalorder %s20, 0
      %p63 = por %p61, %p62
      %s65 = sadd.s32 %s64, 1
      %p68 = scmp.eq.s32.totalorder %s14, 1
      %p69 = scmp.ne.s32.totalorder %s64, %s66
      %p70 = scmp.eq.s32.totalorder %s14, 0
      %p71 = por %p69, %p70
      %p72 = scmp.ne.s32.totalorder %s64, %s66
      %p73 = scmp.eq.s32.totalorder %s19, 1
      %p74 = por %p72, %p73
      %p75 = scmp.ne.s32.totalorder %s66, %s67
      %p76 = scmp.eq.s32.totalorder %s19, 0
      %p77 = por %p75, %p76
      %p78 = scmp.ne.s32.totalorder %s66, %s67
      %p79 = scmp.eq.s32.totalorder %s20, 1
      %p80 = por %p78, %p79
      %p82 = scmp.ne.s32.totalorder %s67, %s81
      %p83 = scmp.eq.s32.totalorder %s20, 0
      %p84 = por %p82, %p83
      %s85 = ssub.s32 %s14, %s21
      %p86 = scmp.eq.s32.totalorder %s85, 0
      %s88 = sadd.s32 %s87, 1
      %s89 = scalar_select %p86, %s87, %s88
      %p92 = pneg %p86
      %p93 = scmp.eq.s32.totalorder %s14, 1
      %p94 = por %p92, %p93
      %p95 = scmp.ne.s32.totalorder %s87, %s90
      %p96 = scmp.eq.s32.totalorder %s14, 0
      %p97 = por %p95, %p96
      %p98 = scmp.ne.s32.totalorder %s87, %s90
      %p99 = scmp.eq.s32.totalorder %s19, 1
      %p100 = por %p98, %p99
      %p101 = scmp.ne.s32.totalorder %s90, %s91
      %p102 = scmp.eq.s32.totalorder %s19, 0
      %p103 = por %p101, %p102
      %p104 = scmp.ne.s32.totalorder %s90, %s91
      %p105 = scmp.eq.s32.totalorder %s20, 1
      %p106 = por %p104, %p105
      %p108 = scmp.ne.s32.totalorder %s91, %s107
      %p109 = scmp.eq.s32.totalorder %s20, 0
      %p110 = por %p108, %p109
      %s111 = ssub.s32 %s14, %s21
      %p112 = scmp.eq.s32.totalorder %s111, 0
      %s114 = sadd.s32 %s113, 1
      %s115 = scalar_select %p112, %s113, %s114
      %p118 = pneg %p112
      %p119 = scmp.eq.s32.totalorder %s14, 1
      %p120 = por %p118, %p119
      %p121 = scmp.ne.s32.totalorder %s113, %s116
      %p122 = scmp.eq.s32.totalorder %s14, 0
      %p123 = por %p121, %p122
      %p124 = scmp.ne.s32.totalorder %s113, %s116
      %p125 = scmp.eq.s32.totalorder %s19, 1
      %p126 = por %p124, %p125
      %p127 = scmp.ne.s32.totalorder %s116, %s117
      %p128 = scmp.eq.s32.totalorder %s19, 0
      %p129 = por %p127, %p128
      %p130 = scmp.ne.s32.totalorder %s116, %s117
      %p131 = scmp.eq.s32.totalorder %s20, 1
      %p132 = por %p130, %p131
      %p134 = scmp.ne.s32.totalorder %s117, %s133
      %p135 = scmp.eq.s32.totalorder %s20, 0
      %p136 = por %p134, %p135
      %s137 = ssub.s32 %s14, %s21
      %p138 = scmp.eq.s32.totalorder %s137, 0
      %s140 = sadd.s32 %s139, 1
      %s141 = scalar_select %p138, %s139, %s140
      %p144 = pneg %p138
      %p145 = scmp.eq.s32.totalorder %s14, 1
      %p146 = por %p144, %p145
      %p147 = scmp.ne.s32.totalorder %s139, %s142
      %p148 = scmp.eq.s32.totalorder %s14, 0
      %p149 = por %p147, %p148
      %p150 = scmp.ne.s32.totalorder %s139, %s142
      %p151 = scmp.eq.s32.totalorder %s19, 1
      %p152 = por %p150, %p151
      %p153 = scmp.ne.s32.totalorder %s142, %s143
      %p154 = scmp.eq.s32.totalorder %s19, 0
      %p155 = por %p153, %p154
      %p156 = scmp.ne.s32.totalorder %s142, %s143
      %p157 = scmp.eq.s32.totalorder %s20, 1
      %p158 = por %p156, %p157
      %p160 = scmp.ne.s32.totalorder %s143, %s159
      %p161 = scmp.eq.s32.totalorder %s20, 0
      %p162 = por %p160, %p161
      %p163 = scmp.le.s32.totalorder 1, %s14
      %p164 = scmp.lt.s32.totalorder %s14, 3
      %p165 = pnand %p163, %p164
      %p166 = pneg %p165
      // Predicated region
      $region9: #{spherical_basis_layer.1} parent=5 // pred_check
        _
      $region10: #{spherical_basis_layer.1} parent=5 // pred_check_branch
        %168 = sbr.rel (%p165) target = $region12
      $region11: #{spherical_basis_layer.1} parent=5 // pred_region
        %s169 = ssub.s32 %s14, 1
        // Predicated region
        $region13: #{spherical_basis_layer.1} parent=11 // pred_check
          %p170 = pneg %p35
        $region14: #{spherical_basis_layer.1} parent=11 // pred_check_branch
          %172 = sbr.rel (%p170) target = $region16
        $region15: #{spherical_basis_layer.1} parent=11 // pred_region
          _
        $region16: #{spherical_basis_layer.1} parent=11 // pred_fallthru
          _
        // Predicated region
        $region17: #{spherical_basis_layer.1} parent=11 // pred_check
          %p173 = pneg %p56
        $region18: #{spherical_basis_layer.1} parent=11 // pred_check_branch
          %175 = sbr.rel (%p173) target = $region20
        $region19: #{spherical_basis_layer.1} parent=11 // pred_region
          _
        $region20: #{spherical_basis_layer.1} parent=11 // pred_fallthru
          _
        // Predicated region
        $region21: #{spherical_basis_layer.1} parent=11 // pred_check
          %p176 = pneg %p77
        $region22: #{spherical_basis_layer.1} parent=11 // pred_check_branch
          %178 = sbr.rel (%p176) target = $region24
        $region23: #{spherical_basis_layer.1} parent=11 // pred_region
          _
        $region24: #{spherical_basis_layer.1} parent=11 // pred_fallthru
          _
      $region12: #{spherical_basis_layer.1} parent=5 // pred_fallthru
        _
      %p179 = scmp.lt.s32.totalorder %s14, 2
      // Predicated region
      $region25: #{spherical_basis_layer.1} parent=5 // pred_check
        %p180 = pneg %p179
      $region26: #{spherical_basis_layer.1} parent=5 // pred_check_branch
        %182 = sbr.rel (%p180) target = $region28
      $region27: #{spherical_basis_layer.1} parent=5 // pred_region
        // Predicated region
        $region29: #{spherical_basis_layer.1} parent=27 // pred_check
          %p183 = pneg %p97
        $region30: #{spherical_basis_layer.1} parent=27 // pred_check_branch
          %185 = sbr.rel (%p183) target = $region32
        $region31: #{spherical_basis_layer.1} parent=27 // pred_region
          %p186 = scmp.lt.s32.totalorder %s14, 1
          %s187 = scalar_select %p186, %s14, 1
          %s188 = scalar_lea.vmem %s3, %s187
        $region32: #{spherical_basis_layer.1} parent=27 // pred_fallthru
          _
        // Predicated region
        $region33: #{spherical_basis_layer.1} parent=27 // pred_check
          %p189 = pneg %p123
        $region34: #{spherical_basis_layer.1} parent=27 // pred_check_branch
          %191 = sbr.rel (%p189) target = $region36
        $region35: #{spherical_basis_layer.1} parent=27 // pred_region
          %p192 = scmp.lt.s32.totalorder %s14, 1
          %s193 = scalar_select %p192, %s14, 1
          %s194 = scalar_lea.vmem %s4, %s193
        $region36: #{spherical_basis_layer.1} parent=27 // pred_fallthru
          _
      $region28: #{spherical_basis_layer.1} parent=5 // pred_fallthru
        _
      %p195 = scmp.le.s32.totalorder 1, %s14
      %p196 = scmp.lt.s32.totalorder %s14, 3
      %p197 = pnand %p195, %p196
      %p198 = pneg %p197
      // Predicated region
      $region37: #{spherical_basis_layer.1} parent=5 // pred_check
        _
      $region38: #{spherical_basis_layer.1} parent=5 // pred_check_branch
        %200 = sbr.rel (%p197) target = $region40
      $region39: #{spherical_basis_layer.1} parent=5 // pred_region
        %s201 = ssub.s32 %s14, 1
        %p202 = pneg %p35
        %p203 = pneg %p32
        %p204 = pneg %p56
        %p205 = pneg %p53
        %p206 = pneg %p77
        %p207 = pneg %p74
        %p208 = scmp.lt.s32.totalorder %s19, 1
        %s209 = scalar_select %p208, %s19, 1
        %s210 = scalar_lea.vmem %s3, %s209
        %p211 = pneg %p103
        %p212 = pneg %p100
        %p213 = scmp.lt.s32.totalorder %s19, 1
        %s214 = scalar_select %p213, %s19, 1
        %s215 = scalar_lea.vmem %s4, %s214
        %p216 = pneg %p129
        %p217 = pneg %p126
        %p218 = pneg %p155
        %p219 = pneg %p152
        %s220 = sand.u32 %s142, 1
        %s221 = scalar_lea.sflag [#allocation3], %s220
        %s222 = sand.u32 %s142, 1
        %s223 = smul.addr %s222, 24
        %s224 = scalar_lea.vmem [#allocation2], %s223
        %p225 = scmp.lt.s32.totalorder %s19, 1
        %s226 = scalar_select %p225, %s19, 1
        %s227 = scalar_lea.vmem %s3, %s226
        %p228 = scmp.lt.s32.totalorder %s19, 1
        %s229 = scalar_select %p228, %s19, 1
        %s230 = scalar_lea.vmem %s4, %s229
        %v231 = vld [vmem:[%s227] sm:$0x1]
        %v232 = vmul.f32 %v231, 0.2
        %v233 = vrcp.pop %v232
        %v234 = vmul.f32 1.0, %v233
        %v235 = vmul.f32 %v232, %v232
        %v236 = vmul.f32 %v235, %v232
        %v237 = vmul.f32 %v236, %v232
        %v238 = vmul.f32 %v237, %v232
        %vm239 = vcmp.lt.f32.partialorder %v232, 1.0
        %v240 = vmul.f32 %v232, -21.0
        %v241 = vadd.f32 %v240, 48.0
        %v242 = vmul.f32 %v232, %v241
        %v243 = vadd.f32 %v242, -28.0
        %v244 = vmul.f32 %v238, %v243
        %v245 = vadd.f32 %v234, %v244
        %v246 = vsel %vm239, %v245, 0.0
        %v247 = vld [vmem:[%s230] sm:$0x1]
        %v248 = vand.u32 2147483647, %v247
        %vm249 = vcmp.le.f32.partialorder %v248, 0.7853982
        %vm250 = vcmp.lt.s32.totalorder %v247, 0
        %v251 = vand.u32 %v247, 2139095040
        %v252 = vshrl.u32 %v251, 23
        %v253 = vsub.s32 %v252, 127
        %v254 = vand.u32 2147483647, %v247
        %v255 = vand.u32 %v254, 8388607
        %v256 = vor.u32 %v255, 8388608
        %v257 = vsub.s32 0, %v256
        %v258 = vadd.s32 %v253, 1
        %vm259 = vcmp.gt.s32.totalorder %v258, 0
        %v260 = vsel %vm259, %v258, 0
        %v261 = vshrl.u32 %v260, 5
        %v262 = vand.u32 %v260, 31
        %v263 = vsub.s32 32, %v262
        %v264 = vshrl.u32 683565275, %v263
        %v265 = vshll.u32 683565275, %v262
        %v266 = vshrl.u32 2475754826, %v263
        %v267 = vor.u32 %v265, %v266
        %v268 = vshll.u32 2475754826, %v262
        %v269 = vshrl.u32 2131351028, %v263
        %v270 = vor.u32 %v268, %v269
        %v271 = vshll.u32 2131351028, %v262
        %v272 = vshrl.u32 2102212464, %v263
        %v273 = vor.u32 %v271, %v272
        %v274 = vshll.u32 2102212464, %v262
        %v275 = vshrl.u32 920167782, %v263
        %v276 = vor.u32 %v274, %v275
        %v277 = vshll.u32 920167782, %v262
        %v278 = vshrl.u32 1326507024, %v263
        %v279 = vor.u32 %v277, %v278
        %vm280 = vcmp.lt.s32.totalorder %v261, 1
        %vm281 = vcmp.lt.s32.totalorder %v261, 2
        %vm282 = vcmp.lt.s32.totalorder %v261, 3
        %vm283 = vcmp.lt.s32.totalorder %v261, 4
        %v284 = vsel %vm280, %v264, %v267
        %v285 = vsel %vm283, %v273, 2102212464
        %v286 = vsel %vm282, %v270, %v285
        %v287 = vsel %vm281, %v284, %v286
        %v288 = vsel %vm280, %v267, %v270
        %v289 = vsel %vm283, %v276, 920167782
        %v290 = vsel %vm282, %v273, %v289
        %v291 = vsel %vm281, %v288, %v290
        %v292 = vsel %vm280, %v270, %v273
        %v293 = vsel %vm283, %v279, 1326507024
        %v294 = vsel %vm282, %v276, %v293
        %v295 = vsel %vm281, %v292, %v294
        %v296 = vshll.u32 %v256, 8
        %v297 = vmul.u32.u64.compose %v296, %v295
        %v298 = vextract.low.u32 %v297
        %v299 = vextract.high.u32 %v297
        %v300 = vmul.u32.u64.compose %v296, %v291
        %v301 = vextract.low.u32 %v300
        %v302 = vextract.high.u32 %v300
        %v303 = vmul.u32 %v296, %v287
        %v304 = vadd.s32 %v299, %v301
        %vm305 = vc.u32 %v299, %v301
        %v306 = vadd.s32 %v302, 1
        %v307 = vsel %vm305, %v306, %v302
        %v308 = vadd.s32 %v303, %v307
        %v309 = vadd.s32 %v308, 536870912
        %v310 = vshrl.u32 %v309, 30
        %v311 = vshll.u32 %v310, 30
        %v312 = vsub.s32 %v308, %v311
        %vm313 = vcmp.lt.s32.totalorder %v312, 0
        %v314 = vsub.s32 0, %v312
        %v315 = vsel %vm313, %v314, %v312
        %v316 = vclz %v315
        %v317 = vsub.s32 %v316, 2
        %vm318 = vcmp.gt.s32.totalorder 0, %v317
        %v319 = vsel %vm318, 0, %v317
        %v320 = vsub.s32 32, %v319
        %v321 = vshll.u32 %v312, %v319
        %v322 = vshrl.u32 %v304, %v320
        %v323 = vor.u32 %v321, %v322
        %v324 = vsub.s32 4294967266, %v319
        %v325 = vadd.s32 %v324, 127
        %v326 = vshll.u32 %v325, 23
        %v327 = vor.u32 4788187, %v326
        %v328 = vand.u32 2147483647, %v327
        %v330 = vcvt.s32.f32 %v323
        %v331 = vmul.f32 %v330, %v328
        %v332 = vxor.u32 %v331, 2147483648
        %v333 = vsel %vm250, %v332, %v331
        %v334 = vsub.s32 4, %v310
        %v335 = vsel %vm250, %v334, %v310
        %v336 = vsel %vm249, %v247, %v333
        %v337 = vsel %vm249, 0, %v335
        %v338 = vcosq.f32.pop %v336
        %v339 = vsinq.f32.pop %v336
        %vm340 = vweird.f32 %v247
        %v341 = vand.u32 %v337, 3
        %vm342 = vcmp.lt.s32.totalorder %v341, 2
        %vm343 = vcmp.eq.s32.totalorder %v341, 0
        %v344 = vxor.u32 %v339, 2147483648
        %v345 = vsel %vm343, %v338, %v344
        %vm346 = vcmp.eq.s32.totalorder %v341, 2
        %v347 = vxor.u32 %v338, 2147483648
        %v348 = vsel %vm346, %v347, %v339
        %v349 = vsel %vm342, %v345, %v348
        %v350 = vsel %vm340, nan, %v349
        %v351 = vld [vmem:[%s0] sm:$0xff]
        %v352 = vld [vmem:[%s1] sm:$0xff]
        %v353 = vld [vmem:[%s2] sm:$0xff]
        %355 = vset.pattern.permute.xlu0 0
        %356 = vperm.xlu0 %355, %v351
        %v357 = vpop.permute.xlu0 %356
        %v360 = vlaneseq
        %v361 = vshrl.u32 %v360, 7
        %v362 = vsub.s32 0, %v361
        %v363 = vrot.slane %v232, %v362
        %v365 = vmul.f32 %v357, %v363
        %367 = vset.pattern.permute.xlu0 0
        %368 = vperm.xlu0 %367, %v352
        %v369 = vpop.permute.xlu0 %368
        %v372 = vlaneseq
        %v373 = vshrl.u32 %v372, 7
        %v374 = vsub.s32 0, %v373
        %v375 = vrot.slane %v234, %v374
        %v377 = vmul.f32 %v369, %v375
        %v378 = vand.u32 2147483647, %v365
        %vm379 = vcmp.le.f32.partialorder %v378, 0.7853982
        %vm380 = vcmp.lt.s32.totalorder %v365, 0
        %v381 = vand.u32 %v365, 2139095040
        %v382 = vshrl.u32 %v381, 23
        %v383 = vsub.s32 %v382, 127
        %v384 = vand.u32 2147483647, %v365
        %v385 = vand.u32 %v384, 8388607
        %v386 = vor.u32 %v385, 8388608
        %v387 = vsub.s32 0, %v386
        %v388 = vadd.s32 %v383, 1
        %vm389 = vcmp.gt.s32.totalorder %v388, 0
        %v390 = vsel %vm389, %v388, 0
        %v391 = vshrl.u32 %v390, 5
        %v392 = vand.u32 %v390, 31
        %v393 = vsub.s32 32, %v392
        %v394 = vshrl.u32 683565275, %v393
        %v395 = vshll.u32 683565275, %v392
        %v396 = vshrl.u32 2475754826, %v393
        %v397 = vor.u32 %v395, %v396
        %v398 = vshll.u32 2475754826, %v392
        %v399 = vshrl.u32 2131351028, %v393
        %v400 = vor.u32 %v398, %v399
        %v401 = vshll.u32 2131351028, %v392
        %v402 = vshrl.u32 2102212464, %v393
        %v403 = vor.u32 %v401, %v402
        %v404 = vshll.u32 2102212464, %v392
        %v405 = vshrl.u32 920167782, %v393
        %v406 = vor.u32 %v404, %v405
        %v407 = vshll.u32 920167782, %v392
        %v408 = vshrl.u32 1326507024, %v393
        %v409 = vor.u32 %v407, %v408
        %vm410 = vcmp.lt.s32.totalorder %v391, 1
        %vm411 = vcmp.lt.s32.totalorder %v391, 2
        %vm412 = vcmp.lt.s32.totalorder %v391, 3
        %vm413 = vcmp.lt.s32.totalorder %v391, 4
        %v414 = vsel %vm410, %v394, %v397
        %v415 = vsel %vm413, %v403, 2102212464
        %v416 = vsel %vm412, %v400, %v415
        %v417 = vsel %vm411, %v414, %v416
        %v418 = vsel %vm410, %v397, %v400
        %v419 = vsel %vm413, %v406, 920167782
        %v420 = vsel %vm412, %v403, %v419
        %v421 = vsel %vm411, %v418, %v420
        %v422 = vsel %vm410, %v400, %v403
        %v423 = vsel %vm413, %v409, 1326507024
        %v424 = vsel %vm412, %v406, %v423
        %v425 = vsel %vm411, %v422, %v424
        %v426 = vshll.u32 %v386, 8
        %v427 = vmul.u32.u64.compose %v426, %v425
        %v428 = vextract.low.u32 %v427
        %v429 = vextract.high.u32 %v427
        %v430 = vmul.u32.u64.compose %v426, %v421
        %v431 = vextract.low.u32 %v430
        %v432 = vextract.high.u32 %v430
        %v433 = vmul.u32 %v426, %v417
        %v434 = vadd.s32 %v429, %v431
        %vm435 = vc.u32 %v429, %v431
        %v436 = vadd.s32 %v432, 1
        %v437 = vsel %vm435, %v436, %v432
        %v438 = vadd.s32 %v433, %v437
        %v439 = vadd.s32 %v438, 536870912
        %v440 = vshrl.u32 %v439, 30
        %v441 = vshll.u32 %v440, 30
        %v442 = vsub.s32 %v438, %v441
        %vm443 = vcmp.lt.s32.totalorder %v442, 0
        %v444 = vsub.s32 0, %v442
        %v445 = vsel %vm443, %v444, %v442
        %v446 = vclz %v445
        %v447 = vsub.s32 %v446, 2
        %vm448 = vcmp.gt.s32.totalorder 0, %v447
        %v449 = vsel %vm448, 0, %v447
        %v450 = vsub.s32 32, %v449
        %v451 = vshll.u32 %v442, %v449
        %v452 = vshrl.u32 %v434, %v450
        %v453 = vor.u32 %v451, %v452
        %v454 = vsub.s32 4294967266, %v449
        %v455 = vadd.s32 %v454, 127
        %v456 = vshll.u32 %v455, 23
        %v457 = vor.u32 4788187, %v456
        %v458 = vand.u32 2147483647, %v457
        %v460 = vcvt.s32.f32 %v453
        %v461 = vmul.f32 %v460, %v458
        %v462 = vxor.u32 %v461, 2147483648
        %v463 = vsel %vm380, %v462, %v461
        %v464 = vsub.s32 4, %v440
        %v465 = vsel %vm380, %v464, %v440
        %v466 = vsel %vm379, %v365, %v463
        %v467 = vsel %vm379, 0, %v465
        %v468 = vcosq.f32.pop %v466
        %v469 = vsinq.f32.pop %v466
        %vm470 = vweird.f32 %v365
        %v471 = vadd.s32 %v467, 3
        %v472 = vand.u32 %v471, 3
        %vm473 = vcmp.lt.s32.totalorder %v472, 2
        %vm474 = vcmp.eq.s32.totalorder %v472, 0
        %v475 = vxor.u32 %v469, 2147483648
        %v476 = vsel %vm474, %v468, %v475
        %vm477 = vcmp.eq.s32.totalorder %v472, 2
        %v478 = vxor.u32 %v468, 2147483648
        %v479 = vsel %vm477, %v478, %v469
        %v480 = vsel %vm473, %v476, %v479
        %v481 = vsel %vm470, nan, %v480
        %v482 = vmul.f32 %v481, %v377
        %484 = vset.pattern.permute.xlu0 0
        %485 = vperm.xlu0 %484, %v353
        %v486 = vpop.permute.xlu0 %485
        %v488 = vmul.f32 %v486, %v482
        %v490 = vlaneseq
        %v491 = vshrl.u32 %v490, 7
        %v492 = vsub.s32 0, %v491
        %v493 = vrot.slane %v246, %v492
        %v495 = vmul.f32 %v493, %v488
        %496 = vst [vmem:[%s224] sm:$0xff] %v495
        %v497 = vmul.f32 %v246, %v350
        %v498 = vld [vmem:[%s0 + $0x8] sm:$0xff]
        %v499 = vld [vmem:[%s1 + $0x8] sm:$0xff]
        %v500 = vld [vmem:[%s2 + $0x8] sm:$0xff]
        %502 = vset.pattern.permute.xlu0 0
        %503 = vperm.xlu0 %502, %v498
        %v504 = vpop.permute.xlu0 %503
        %v506 = vmul.f32 %v504, %v363
        %508 = vset.pattern.permute.xlu0 0
        %509 = vperm.xlu0 %508, %v499
        %v510 = vpop.permute.xlu0 %509
        %v512 = vmul.f32 %v510, %v375
        %v513 = vand.u32 2147483647, %v506
        %vm514 = vcmp.le.f32.partialorder %v513, 0.7853982
        %vm515 = vcmp.lt.s32.totalorder %v506, 0
        %v516 = vand.u32 %v506, 2139095040
        %v517 = vshrl.u32 %v516, 23
        %v518 = vsub.s32 %v517, 127
        %v519 = vand.u32 2147483647, %v506
        %v520 = vand.u32 %v519, 8388607
        %v521 = vor.u32 %v520, 8388608
        %v522 = vsub.s32 0, %v521
        %v523 = vadd.s32 %v518, 1
        %vm524 = vcmp.gt.s32.totalorder %v523, 0
        %v525 = vsel %vm524, %v523, 0
        %v526 = vshrl.u32 %v525, 5
        %v527 = vand.u32 %v525, 31
        %v528 = vsub.s32 32, %v527
        %v529 = vshrl.u32 683565275, %v528
        %v530 = vshll.u32 683565275, %v527
        %v531 = vshrl.u32 2475754826, %v528
        %v532 = vor.u32 %v530, %v531
        %v533 = vshll.u32 2475754826, %v527
        %v534 = vshrl.u32 2131351028, %v528
        %v535 = vor.u32 %v533, %v534
        %v536 = vshll.u32 2131351028, %v527
        %v537 = vshrl.u32 2102212464, %v528
        %v538 = vor.u32 %v536, %v537
        %v539 = vshll.u32 2102212464, %v527
        %v540 = vshrl.u32 920167782, %v528
        %v541 = vor.u32 %v539, %v540
        %v542 = vshll.u32 920167782, %v527
        %v543 = vshrl.u32 1326507024, %v528
        %v544 = vor.u32 %v542, %v543
        %vm545 = vcmp.lt.s32.totalorder %v526, 1
        %vm546 = vcmp.lt.s32.totalorder %v526, 2
        %vm547 = vcmp.lt.s32.totalorder %v526, 3
        %vm548 = vcmp.lt.s32.totalorder %v526, 4
        %v549 = vsel %vm545, %v529, %v532
        %v550 = vsel %vm548, %v538, 2102212464
        %v551 = vsel %vm547, %v535, %v550
        %v552 = vsel %vm546, %v549, %v551
        %v553 = vsel %vm545, %v532, %v535
        %v554 = vsel %vm548, %v541, 920167782
        %v555 = vsel %vm547, %v538, %v554
        %v556 = vsel %vm546, %v553, %v555
        %v557 = vsel %vm545, %v535, %v538
        %v558 = vsel %vm548, %v544, 1326507024
        %v559 = vsel %vm547, %v541, %v558
        %v560 = vsel %vm546, %v557, %v559
        %v561 = vshll.u32 %v521, 8
        %v562 = vmul.u32.u64.compose %v561, %v560
        %v563 = vextract.low.u32 %v562
        %v564 = vextract.high.u32 %v562
        %v565 = vmul.u32.u64.compose %v561, %v556
        %v566 = vextract.low.u32 %v565
        %v567 = vextract.high.u32 %v565
        %v568 = vmul.u32 %v561, %v552
        %v569 = vadd.s32 %v564, %v566
        %vm570 = vc.u32 %v564, %v566
        %v571 = vadd.s32 %v567, 1
        %v572 = vsel %vm570, %v571, %v567
        %v573 = vadd.s32 %v568, %v572
        %v574 = vadd.s32 %v573, 536870912
        %v575 = vshrl.u32 %v574, 30
        %v576 = vshll.u32 %v575, 30
        %v577 = vsub.s32 %v573, %v576
        %vm578 = vcmp.lt.s32.totalorder %v577, 0
        %v579 = vsub.s32 0, %v577
        %v580 = vsel %vm578, %v579, %v577
        %v581 = vclz %v580
        %v582 = vsub.s32 %v581, 2
        %vm583 = vcmp.gt.s32.totalorder 0, %v582
        %v584 = vsel %vm583, 0, %v582
        %v585 = vsub.s32 32, %v584
        %v586 = vshll.u32 %v577, %v584
        %v587 = vshrl.u32 %v569, %v585
        %v588 = vor.u32 %v586, %v587
        %v589 = vsub.s32 4294967266, %v584
        %v590 = vadd.s32 %v589, 127
        %v591 = vshll.u32 %v590, 23
        %v592 = vor.u32 4788187, %v591
        %v593 = vand.u32 2147483647, %v592
        %v595 = vcvt.s32.f32 %v588
        %v596 = vmul.f32 %v595, %v593
        %v597 = vxor.u32 %v596, 2147483648
        %v598 = vsel %vm515, %v597, %v596
        %v599 = vsub.s32 4, %v575
        %v600 = vsel %vm515, %v599, %v575
        %v601 = vsel %vm514, %v506, %v598
        %v602 = vsel %vm514, 0, %v600
        %v603 = vcosq.f32.pop %v601
        %v604 = vsinq.f32.pop %v601
        %vm605 = vweird.f32 %v506
        %v606 = vadd.s32 %v602, 3
        %v607 = vand.u32 %v606, 3
        %vm608 = vcmp.lt.s32.totalorder %v607, 2
        %vm609 = vcmp.eq.s32.totalorder %v607, 0
        %v610 = vxor.u32 %v604, 2147483648
        %v611 = vsel %vm609, %v603, %v610
        %vm612 = vcmp.eq.s32.totalorder %v607, 2
        %v613 = vxor.u32 %v603, 2147483648
        %v614 = vsel %vm612, %v613, %v604
        %v615 = vsel %vm608, %v611, %v614
        %v616 = vsel %vm605, nan, %v615
        %v617 = vmul.f32 %v616, %v512
        %v618 = vand.u32 2147483647, %v506
        %vm619 = vcmp.le.f32.partialorder %v618, 0.7853982
        %vm620 = vcmp.lt.s32.totalorder %v506, 0
        %v621 = vand.u32 %v506, 2139095040
        %v622 = vshrl.u32 %v621, 23
        %v623 = vsub.s32 %v622, 127
        %v624 = vand.u32 2147483647, %v506
        %v625 = vand.u32 %v624, 8388607
        %v626 = vor.u32 %v625, 8388608
        %v627 = vsub.s32 0, %v626
        %v628 = vadd.s32 %v623, 1
        %vm629 = vcmp.gt.s32.totalorder %v628, 0
        %v630 = vsel %vm629, %v628, 0
        %v631 = vshrl.u32 %v630, 5
        %v632 = vand.u32 %v630, 31
        %v633 = vsub.s32 32, %v632
        %v634 = vshrl.u32 683565275, %v633
        %v635 = vshll.u32 683565275, %v632
        %v636 = vshrl.u32 2475754826, %v633
        %v637 = vor.u32 %v635, %v636
        %v638 = vshll.u32 2475754826, %v632
        %v639 = vshrl.u32 2131351028, %v633
        %v640 = vor.u32 %v638, %v639
        %v641 = vshll.u32 2131351028, %v632
        %v642 = vshrl.u32 2102212464, %v633
        %v643 = vor.u32 %v641, %v642
        %v644 = vshll.u32 2102212464, %v632
        %v645 = vshrl.u32 920167782, %v633
        %v646 = vor.u32 %v644, %v645
        %v647 = vshll.u32 920167782, %v632
        %v648 = vshrl.u32 1326507024, %v633
        %v649 = vor.u32 %v647, %v648
        %vm650 = vcmp.lt.s32.totalorder %v631, 1
        %vm651 = vcmp.lt.s32.totalorder %v631, 2
        %vm652 = vcmp.lt.s32.totalorder %v631, 3
        %vm653 = vcmp.lt.s32.totalorder %v631, 4
        %v654 = vsel %vm650, %v634, %v637
        %v655 = vsel %vm653, %v643, 2102212464
        %v656 = vsel %vm652, %v640, %v655
        %v657 = vsel %vm651, %v654, %v656
        %v658 = vsel %vm650, %v637, %v640
        %v659 = vsel %vm653, %v646, 920167782
        %v660 = vsel %vm652, %v643, %v659
        %v661 = vsel %vm651, %v658, %v660
        %v662 = vsel %vm650, %v640, %v643
        %v663 = vsel %vm653, %v649, 1326507024
        %v664 = vsel %vm652, %v646, %v663
        %v665 = vsel %vm651, %v662, %v664
        %v666 = vshll.u32 %v626, 8
        %v667 = vmul.u32.u64.compose %v666, %v665
        %v668 = vextract.low.u32 %v667
        %v669 = vextract.high.u32 %v667
        %v670 = vmul.u32.u64.compose %v666, %v661
        %v671 = vextract.low.u32 %v670
        %v672 = vextract.high.u32 %v670
        %v673 = vmul.u32 %v666, %v657
        %v674 = vadd.s32 %v669, %v671
        %vm675 = vc.u32 %v669, %v671
        %v676 = vadd.s32 %v672, 1
        %v677 = vsel %vm675, %v676, %v672
        %v678 = vadd.s32 %v673, %v677
        %v679 = vadd.s32 %v678, 536870912
        %v680 = vshrl.u32 %v679, 30
        %v681 = vshll.u32 %v680, 30
        %v682 = vsub.s32 %v678, %v681
        %vm683 = vcmp.lt.s32.totalorder %v682, 0
        %v684 = vsub.s32 0, %v682
        %v685 = vsel %vm683, %v684, %v682
        %v686 = vclz %v685
        %v687 = vsub.s32 %v686, 2
        %vm688 = vcmp.gt.s32.totalorder 0, %v687
        %v689 = vsel %vm688, 0, %v687
        %v690 = vsub.s32 32, %v689
        %v691 = vshll.u32 %v682, %v689
        %v692 = vshrl.u32 %v674, %v690
        %v693 = vor.u32 %v691, %v692
        %v694 = vsub.s32 4294967266, %v689
        %v695 = vadd.s32 %v694, 127
        %v696 = vshll.u32 %v695, 23
        %v697 = vor.u32 4788187, %v696
        %v698 = vand.u32 2147483647, %v697
        %v700 = vcvt.s32.f32 %v693
        %v701 = vmul.f32 %v700, %v698
        %v702 = vxor.u32 %v701, 2147483648
        %v703 = vsel %vm620, %v702, %v701
        %v704 = vsub.s32 4, %v680
        %v705 = vsel %vm620, %v704, %v680
        %v706 = vsel %vm619, %v506, %v703
        %v707 = vsel %vm619, 0, %v705
        %v708 = vcosq.f32.pop %v706
        %v709 = vsinq.f32.pop %v706
        %vm710 = vweird.f32 %v506
        %v711 = vand.u32 %v707, 3
        %vm712 = vcmp.lt.s32.totalorder %v711, 2
        %vm713 = vcmp.eq.s32.totalorder %v711, 0
        %v714 = vxor.u32 %v709, 2147483648
        %v715 = vsel %vm713, %v708, %v714
        %vm716 = vcmp.eq.s32.totalorder %v711, 2
        %v717 = vxor.u32 %v708, 2147483648
        %v718 = vsel %vm716, %v717, %v709
        %v719 = vsel %vm712, %v715, %v718
        %v720 = vsel %vm710, nan, %v719
        %v721 = vsub.f32 %v617, %v720
        %v722 = vmul.f32 %v721, %v512
        %724 = vset.pattern.permute.xlu0 0
        %725 = vperm.xlu0 %724, %v500
        %v726 = vpop.permute.xlu0 %725
        %v728 = vmul.f32 %v726, %v722
        %v730 = vlaneseq
        %v731 = vshrl.u32 %v730, 7
        %v732 = vsub.s32 0, %v731
        %v733 = vrot.slane %v497, %v732
        %v735 = vmul.f32 %v733, %v728
        %736 = vst [vmem:[%s224 + $0x8] sm:$0xff] %v735
        %v737 = vmul.f32 %v350, 3.0
        %v738 = vmul.f32 %v737, %v350
        %v739 = vsub.f32 %v738, 1.0
        %v740 = vmul.f32 %v739, 0.5
        %v741 = vmul.f32 %v246, %v740
        %v742 = vld [vmem:[%s0 + $0x10] sm:$0xff]
        %v743 = vld [vmem:[%s1 + $0x10] sm:$0xff]
        %v744 = vld [vmem:[%s2 + $0x10] sm:$0xff]
        %746 = vset.pattern.permute.xlu0 0
        %747 = vperm.xlu0 %746, %v742
        %v748 = vpop.permute.xlu0 %747
        %v750 = vmul.f32 %v748, %v363
        %752 = vset.pattern.permute.xlu0 0
        %753 = vperm.xlu0 %752, %v743
        %v754 = vpop.permute.xlu0 %753
        %v756 = vmul.f32 %v754, %v375
        %v757 = vand.u32 2147483647, %v750
        %vm758 = vcmp.le.f32.partialorder %v757, 0.7853982
        %vm759 = vcmp.lt.s32.totalorder %v750, 0
        %v760 = vand.u32 %v750, 2139095040
        %v761 = vshrl.u32 %v760, 23
        %v762 = vsub.s32 %v761, 127
        %v763 = vand.u32 2147483647, %v750
        %v764 = vand.u32 %v763, 8388607
        %v765 = vor.u32 %v764, 8388608
        %v766 = vsub.s32 0, %v765
        %v767 = vadd.s32 %v762, 1
        %vm768 = vcmp.gt.s32.totalorder %v767, 0
        %v769 = vsel %vm768, %v767, 0
        %v770 = vshrl.u32 %v769, 5
        %v771 = vand.u32 %v769, 31
        %v772 = vsub.s32 32, %v771
        %v773 = vshrl.u32 683565275, %v772
        %v774 = vshll.u32 683565275, %v771
        %v775 = vshrl.u32 2475754826, %v772
        %v776 = vor.u32 %v774, %v775
        %v777 = vshll.u32 2475754826, %v771
        %v778 = vshrl.u32 2131351028, %v772
        %v779 = vor.u32 %v777, %v778
        %v780 = vshll.u32 2131351028, %v771
        %v781 = vshrl.u32 2102212464, %v772
        %v782 = vor.u32 %v780, %v781
        %v783 = vshll.u32 2102212464, %v771
        %v784 = vshrl.u32 920167782, %v772
        %v785 = vor.u32 %v783, %v784
        %v786 = vshll.u32 920167782, %v771
        %v787 = vshrl.u32 1326507024, %v772
        %v788 = vor.u32 %v786, %v787
        %vm789 = vcmp.lt.s32.totalorder %v770, 1
        %vm790 = vcmp.lt.s32.totalorder %v770, 2
        %vm791 = vcmp.lt.s32.totalorder %v770, 3
        %vm792 = vcmp.lt.s32.totalorder %v770, 4
        %v793 = vsel %vm789, %v773, %v776
        %v794 = vsel %vm792, %v782, 2102212464
        %v795 = vsel %vm791, %v779, %v794
        %v796 = vsel %vm790, %v793, %v795
        %v797 = vsel %vm789, %v776, %v779
        %v798 = vsel %vm792, %v785, 920167782
        %v799 = vsel %vm791, %v782, %v798
        %v800 = vsel %vm790, %v797, %v799
        %v801 = vsel %vm789, %v779, %v782
        %v802 = vsel %vm792, %v788, 1326507024
        %v803 = vsel %vm791, %v785, %v802
        %v804 = vsel %vm790, %v801, %v803
        %v805 = vshll.u32 %v765, 8
        %v806 = vmul.u32.u64.compose %v805, %v804
        %v807 = vextract.low.u32 %v806
        %v808 = vextract.high.u32 %v806
        %v809 = vmul.u32.u64.compose %v805, %v800
        %v810 = vextract.low.u32 %v809
        %v811 = vextract.high.u32 %v809
        %v812 = vmul.u32 %v805, %v796
        %v813 = vadd.s32 %v808, %v810
        %vm814 = vc.u32 %v808, %v810
        %v815 = vadd.s32 %v811, 1
        %v816 = vsel %vm814, %v815, %v811
        %v817 = vadd.s32 %v812, %v816
        %v818 = vadd.s32 %v817, 536870912
        %v819 = vshrl.u32 %v818, 30
        %v820 = vshll.u32 %v819, 30
        %v821 = vsub.s32 %v817, %v820
        %vm822 = vcmp.lt.s32.totalorder %v821, 0
        %v823 = vsub.s32 0, %v821
        %v824 = vsel %vm822, %v823, %v821
        %v825 = vclz %v824
        %v826 = vsub.s32 %v825, 2
        %vm827 = vcmp.gt.s32.totalorder 0, %v826
        %v828 = vsel %vm827, 0, %v826
        %v829 = vsub.s32 32, %v828
        %v830 = vshll.u32 %v821, %v828
        %v831 = vshrl.u32 %v813, %v829
        %v832 = vor.u32 %v830, %v831
        %v833 = vsub.s32 4294967266, %v828
        %v834 = vadd.s32 %v833, 127
        %v835 = vshll.u32 %v834, 23
        %v836 = vor.u32 4788187, %v835
        %v837 = vand.u32 2147483647, %v836
        %v839 = vcvt.s32.f32 %v832
        %v840 = vmul.f32 %v839, %v837
        %v841 = vxor.u32 %v840, 2147483648
        %v842 = vsel %vm759, %v841, %v840
        %v843 = vsub.s32 4, %v819
        %v844 = vsel %vm759, %v843, %v819
        %v845 = vsel %vm758, %v750, %v842
        %v846 = vsel %vm758, 0, %v844
        %v847 = vcosq.f32.pop %v845
        %v848 = vsinq.f32.pop %v845
        %vm849 = vweird.f32 %v750
        %v850 = vadd.s32 %v846, 3
        %v851 = vand.u32 %v850, 3
        %vm852 = vcmp.lt.s32.totalorder %v851, 2
        %vm853 = vcmp.eq.s32.totalorder %v851, 0
        %v854 = vxor.u32 %v848, 2147483648
        %v855 = vsel %vm853, %v847, %v854
        %vm856 = vcmp.eq.s32.totalorder %v851, 2
        %v857 = vxor.u32 %v847, 2147483648
        %v858 = vsel %vm856, %v857, %v848
        %v859 = vsel %vm852, %v855, %v858
        %v860 = vsel %vm849, nan, %v859
        %v861 = vmul.f32 %v860, %v756
        %v862 = vand.u32 2147483647, %v750
        %vm863 = vcmp.le.f32.partialorder %v862, 0.7853982
        %vm864 = vcmp.lt.s32.totalorder %v750, 0
        %v865 = vand.u32 %v750, 2139095040
        %v866 = vshrl.u32 %v865, 23
        %v867 = vsub.s32 %v866, 127
        %v868 = vand.u32 2147483647, %v750
        %v869 = vand.u32 %v868, 8388607
        %v870 = vor.u32 %v869, 8388608
        %v871 = vsub.s32 0, %v870
        %v872 = vadd.s32 %v867, 1
        %vm873 = vcmp.gt.s32.totalorder %v872, 0
        %v874 = vsel %vm873, %v872, 0
        %v875 = vshrl.u32 %v874, 5
        %v876 = vand.u32 %v874, 31
        %v877 = vsub.s32 32, %v876
        %v878 = vshrl.u32 683565275, %v877
        %v879 = vshll.u32 683565275, %v876
        %v880 = vshrl.u32 2475754826, %v877
        %v881 = vor.u32 %v879, %v880
        %v882 = vshll.u32 2475754826, %v876
        %v883 = vshrl.u32 2131351028, %v877
        %v884 = vor.u32 %v882, %v883
        %v885 = vshll.u32 2131351028, %v876
        %v886 = vshrl.u32 2102212464, %v877
        %v887 = vor.u32 %v885, %v886
        %v888 = vshll.u32 2102212464, %v876
        %v889 = vshrl.u32 920167782, %v877
        %v890 = vor.u32 %v888, %v889
        %v891 = vshll.u32 920167782, %v876
        %v892 = vshrl.u32 1326507024, %v877
        %v893 = vor.u32 %v891, %v892
        %vm894 = vcmp.lt.s32.totalorder %v875, 1
        %vm895 = vcmp.lt.s32.totalorder %v875, 2
        %vm896 = vcmp.lt.s32.totalorder %v875, 3
        %vm897 = vcmp.lt.s32.totalorder %v875, 4
        %v898 = vsel %vm894, %v878, %v881
        %v899 = vsel %vm897, %v887, 2102212464
        %v900 = vsel %vm896, %v884, %v899
        %v901 = vsel %vm895, %v898, %v900
        %v902 = vsel %vm894, %v881, %v884
        %v903 = vsel %vm897, %v890, 920167782
        %v904 = vsel %vm896, %v887, %v903
        %v905 = vsel %vm895, %v902, %v904
        %v906 = vsel %vm894, %v884, %v887
        %v907 = vsel %vm897, %v893, 1326507024
        %v908 = vsel %vm896, %v890, %v907
        %v909 = vsel %vm895, %v906, %v908
        %v910 = vshll.u32 %v870, 8
        %v911 = vmul.u32.u64.compose %v910, %v909
        %v912 = vextract.low.u32 %v911
        %v913 = vextract.high.u32 %v911
        %v914 = vmul.u32.u64.compose %v910, %v905
        %v915 = vextract.low.u32 %v914
        %v916 = vextract.high.u32 %v914
        %v917 = vmul.u32 %v910, %v901
        %v918 = vadd.s32 %v913, %v915
        %vm919 = vc.u32 %v913, %v915
        %v920 = vadd.s32 %v916, 1
        %v921 = vsel %vm919, %v920, %v916
        %v922 = vadd.s32 %v917, %v921
        %v923 = vadd.s32 %v922, 536870912
        %v924 = vshrl.u32 %v923, 30
        %v925 = vshll.u32 %v924, 30
        %v926 = vsub.s32 %v922, %v925
        %vm927 = vcmp.lt.s32.totalorder %v926, 0
        %v928 = vsub.s32 0, %v926
        %v929 = vsel %vm927, %v928, %v926
        %v930 = vclz %v929
        %v931 = vsub.s32 %v930, 2
        %vm932 = vcmp.gt.s32.totalorder 0, %v931
        %v933 = vsel %vm932, 0, %v931
        %v934 = vsub.s32 32, %v933
        %v935 = vshll.u32 %v926, %v933
        %v936 = vshrl.u32 %v918, %v934
        %v937 = vor.u32 %v935, %v936
        %v938 = vsub.s32 4294967266, %v933
        %v939 = vadd.s32 %v938, 127
        %v940 = vshll.u32 %v939, 23
        %v941 = vor.u32 4788187, %v940
        %v942 = vand.u32 2147483647, %v941
        %v944 = vcvt.s32.f32 %v937
        %v945 = vmul.f32 %v944, %v942
        %v946 = vxor.u32 %v945, 2147483648
        %v947 = vsel %vm864, %v946, %v945
        %v948 = vsub.s32 4, %v924
        %v949 = vsel %vm864, %v948, %v924
        %v950 = vsel %vm863, %v750, %v947
        %v951 = vsel %vm863, 0, %v949
        %v952 = vcosq.f32.pop %v950
        %v953 = vsinq.f32.pop %v950
        %vm954 = vweird.f32 %v750
        %v955 = vand.u32 %v951, 3
        %vm956 = vcmp.lt.s32.totalorder %v955, 2
        %vm957 = vcmp.eq.s32.totalorder %v955, 0
        %v958 = vxor.u32 %v953, 2147483648
        %v959 = vsel %vm957, %v952, %v958
        %vm960 = vcmp.eq.s32.totalorder %v955, 2
        %v961 = vxor.u32 %v952, 2147483648
        %v962 = vsel %vm960, %v961, %v953
        %v963 = vsel %vm956, %v959, %v962
        %v964 = vsel %vm954, nan, %v963
        %v965 = vsub.f32 %v861, %v964
        %v966 = vmul.f32 %v965, %v756
        %v967 = vmul.f32 %v756, 3.0
        %v968 = vmul.f32 %v967, %v966
        %v969 = vsub.f32 %v968, %v861
        %971 = vset.pattern.permute.xlu0 0
        %972 = vperm.xlu0 %971, %v744
        %v973 = vpop.permute.xlu0 %972
        %v975 = vmul.f32 %v973, %v969
        %v977 = vlaneseq
        %v978 = vshrl.u32 %v977, 7
        %v979 = vsub.s32 0, %v978
        %v980 = vrot.slane %v741, %v979
        %v982 = vmul.f32 %v980, %v975
        %983 = vst [vmem:[%s224 + $0x10] sm:$0xff] %v982
        %s984 = sand.u32 %s142, 1
        %s985 = scalar_lea.sflag [#allocation3], %s984
        %s986 = sand.u32 %s142, 1
        %s987 = smul.addr %s986, 24
        %s988 = scalar_lea.vmem [#allocation2], %s987
        // Predicated region
        $region41: #{spherical_basis_layer.1} parent=39 // pred_check
          %p989 = pneg %p152
        $region42: #{spherical_basis_layer.1} parent=39 // pred_check_branch
          %991 = sbr.rel (%p989) target = $region44
        $region43: #{spherical_basis_layer.1} parent=39 // pred_region
          %s993 = ssub.s32 384, 384
          %994 = vsyncadd %s985, %s993
          %s995 = smul.addr %s19, 128
          %s996 = scalar_lea.hbm %s5, %s995
          %s997 = sshll.u32 %s988, 4
          %s998 = int_to_ptr.vmem [resolvable:$true] %s997
          %1003 = dma.vmem_to_hbm [thread:$0]  %s998, 384, %s996, %s985, 128, 256, 8
        $region44: #{spherical_basis_layer.1} parent=39 // pred_fallthru
          _
      $region40: #{spherical_basis_layer.1} parent=5 // pred_fallthru
        _
      %p1004 = scmp.le.s32.totalorder 2, %s14
      // Predicated region
      $region45: #{spherical_basis_layer.1} parent=5 // pred_check
        %p1005 = pneg %p1004
      $region46: #{spherical_basis_layer.1} parent=5 // pred_check_branch
        %1007 = sbr.rel (%p1005) target = $region48
      $region47: #{spherical_basis_layer.1} parent=5 // pred_region
        %s1008 = ssub.s32 %s14, 2
        // Predicated region
        $region49: #{spherical_basis_layer.1} parent=47 // pred_check
          %p1009 = pneg %p158
        $region50: #{spherical_basis_layer.1} parent=47 // pred_check_branch
          %1011 = sbr.rel (%p1009) target = $region52
        $region51: #{spherical_basis_layer.1} parent=47 // pred_region
          %s1012 = sand.u32 %s143, 1
          %s1013 = scalar_lea.sflag [#allocation3], %s1012
          %s1014 = sand.u32 %s143, 1
          %s1015 = smul.addr %s1014, 24
          %s1016 = scalar_lea.vmem [#allocation2], %s1015
          %1017 = dma.done %s1013, 384
        $region52: #{spherical_basis_layer.1} parent=47 // pred_fallthru
          _
      $region48: #{spherical_basis_layer.1} parent=5 // pred_fallthru
        _
    $region6: #{spherical_basis_layer.1} parent=1 // loop_footer
      %s18 = sadd.s32 1, %s14
    $region7: #{spherical_basis_layer.1} parent=1 // loop_footer_branch
      %13 = sbr.rel target = $region3
    $region8: #{spherical_basis_layer.1} parent=1 // loop_exit
      _
    %1018 = vsyncpa [#allocation3], 1
    %s1019 = scalar_lea.sflag [#allocation3], 1
    %1020 = vsyncpa %s1019, 1

</llo_original>
